<compile_context>
chip_gen: v5e
topology: v5e:2x2
jax: 0.10.0
libtpu: 0.0.40
codegen_flags: <defaults>
</compile_context>

<pallas_src>
import jax
import jax.numpy as jnp
from jax import lax
from jax.experimental import pallas as pl
from jax.experimental.pallas import tpu as pltpu


LEAK = 0.2


def _leaky(h):
    return jnp.where(h > 0, h, LEAK * h)


def _round_up(x, m):
    return (x + m - 1) // m * m


def _make_qstack_kernel(cin, reg_categorical, n_cat, p_rows, approx_recip=True):
    """Fused kernel (channel-major): q_input + all heads + segmented softmax."""
    reg_categorical = tuple(int(v) for v in reg_categorical)

    def kernel(x_ref, w1_ref, b1_ref, w2_ref, b2_ref, wh_ref, bh_ref, o_ref):
        x = x_ref[...]                                     # (cin, T) f32

        # ---- q_input: conv1x1 -> leaky -> conv1x1 -> leaky ------------------
        if cin == 1:
            # K=1 matmul is a degenerate outer product: keep it on the VPU.
            h = w1_ref[...] * x + b1_ref[...]              # (Hp,1)*(1,T)
        else:
            h = jnp.dot(w1_ref[...], x,
                        preferred_element_type=jnp.float32) + b1_ref[...]
        h = _leaky(h)

        w2 = w2_ref[...]                                   # (Hp, Hp), maybe bf16
        h = jnp.dot(w2, h.astype(w2.dtype),
                    preferred_element_type=jnp.float32) + b2_ref[...]
        h = _leaky(h)                                      # (Hp, T) f32

        # ---- all heads fused into one matmul (channel-major) ----------------
        wh = wh_ref[...]                                   # (P16, Hp), maybe bf16
        z = jnp.dot(wh, h.astype(wh.dtype),
                    preferred_element_type=jnp.float32) + bh_ref[...]
        # z: (P16, T); rows [0, n_cat) categorical, then mean/logstd, then pad.

        row = lax.broadcasted_iota(jnp.int32, (p_rows, 1), 0)   # sublane index
        is_cat = row < n_cat

        # Single-exp segmented softmax over the categorical sublane ranges.
        # 1) per-segment max -> one per-row shift tensor (non-cat rows shift by
        #    their own value so exp() stays bounded and is discarded later).
        shift = z
        off = 0
        for lv in reg_categorical:
            seg = (row >= off) & (row < off + lv)
            zc = jnp.where(seg, z, -jnp.inf)
            m = jnp.max(zc, axis=0, keepdims=True)         # (1, T) XLU reduce
            shift = jnp.where(seg, m, shift)
            off += lv
        # 2) exactly one exp pass over the (P16, T) tile.
        e = jnp.exp(z - shift)
        # 3) per-segment sum -> one per-row scale tensor.
        scale = jnp.ones_like(z)
        off = 0
        for lv in reg_categorical:
            seg = (row >= off) & (row < off + lv)
            s = jnp.sum(jnp.where(seg, e, 0.0), axis=0, keepdims=True)
            scale = jnp.where(seg, pl.reciprocal(s, approx=approx_recip), scale)
            off += lv
        # 4) categorical rows -> softmax probs; gaussian/pad rows -> linear z.
        o_ref[...] = jnp.where(is_cat, e * scale, z).astype(o_ref.dtype)

    return kernel


def init_qstack_params(key, reg_categorical=(10,), reg_gaussian=2,
                       hidden_dim=100, in_dim=1):
    """Deterministic parameter init (shapes match the PyTorch module)."""
    keys = jax.random.split(key, 8 + 2 * len(reg_categorical))
    kit = iter(keys)

    def conv1x1(k, cin, cout):
        # Stored as (cin, cout) matrices; equivalent to Conv2d(cin, cout, 1).
        bound = 1.0 / jnp.sqrt(cin)
        w = jax.random.uniform(k, (cin, cout), jnp.float32, -bound, bound)
        b = jax.random.uniform(jax.random.fold_in(k, 1), (1, cout),
                               jnp.float32, -bound, bound)
        return w, b

    params = {}
    params["w1"], params["b1"] = conv1x1(next(kit), in_dim, hidden_dim)
    params["w2"], params["b2"] = conv1x1(next(kit), hidden_dim, hidden_dim)
    params["cat"] = [conv1x1(next(kit), hidden_dim, lv) for lv in reg_categorical]
    if reg_gaussian > 0:
        params["wm"], params["bm"] = conv1x1(next(kit), hidden_dim, reg_gaussian)
        params["ws"], params["bs"] = conv1x1(next(kit), hidden_dim, reg_gaussian)
    return params


def _pick_tile(hw, tile_hw, n_batch):
    """Lane-dense pixel tile; keep >= 2 total grid steps when possible (v7x)."""
    hw128 = _round_up(max(hw, 1), 128)
    t = min(_round_up(max(tile_hw, 128), 128), hw128)
    while n_batch * pl.cdiv(hw128, t) < 2 and t > 128:
        t = max(128, (t // 2) // 128 * 128)
    return t


def qstack_forward(x_nchw, params, reg_categorical=(10,), reg_gaussian=2,
                   tile_hw=2048, use_bf16=True, approx_recip=True):
    """Pallas-accelerated QStack forward.  x_nchw: (N, 1, H, W) float32.

    tile_hw: pixels (lanes) per grid step; sweep 1024-8192 for large images
             (per-tile VMEM stays well under the 32 MiB scoped default).
    use_bf16: bf16 MXU operands with f32 accumulation (all TPU generations).
    approx_recip: EUP approximate reciprocal in the softmax normalisation;
             set False if exact row-sums are required downstream.
    """
    reg_categorical = tuple(int(v) for v in reg_categorical)
    N, cin, H, W = x_nchw.shape
    HW = H * W
    n_cat = sum(reg_categorical)
    n_gauss = 2 * reg_gaussian if reg_gaussian > 0 else 0
    total = n_cat + n_gauss
    if total <= 0:
        raise ValueError("QStack needs at least one categorical or gaussian head")

    hidden = params["w1"].shape[1]
    Hp = _round_up(hidden, 128)
    P16 = max(_round_up(total, 8), 8)

    t = _pick_tile(HW, tile_hw, N)
    HW_pad = pl.cdiv(HW, t) * t

    mxu_dtype = jnp.bfloat16 if use_bf16 else jnp.float32

    # NCHW -> (N, cin, HW): free reshape (channel-major already), pad pixels.
    x3 = x_nchw.reshape(N, cin, HW).astype(jnp.float32)
    if HW_pad != HW:
        x3 = jnp.pad(x3, ((0, 0), (0, 0), (0, HW_pad - HW)))

    def pad_t(a, rows, cols, dtype=jnp.float32):
        """Transpose a (cin, cout) weight to (cout, cin) and zero-pad."""
        at = jnp.asarray(a, jnp.float32).T
        return jnp.pad(at, ((0, rows - at.shape[0]),
                            (0, cols - at.shape[1]))).astype(dtype)

    # q_input weights, transposed for channel-major compute.
    w1t = pad_t(params["w1"], Hp, cin)                 # VPU path -> keep f32
    b1t = pad_t(params["b1"], Hp, 1)
    w2t = pad_t(params["w2"], Hp, Hp, mxu_dtype)
    b2t = pad_t(params["b2"], Hp, 1)

    # Fuse every head into one (P16, Hp) weight / (P16, 1) bias.
    head_ws = [wc for (wc, _) in params["cat"]]
    head_bs = [bc for (_, bc) in params["cat"]]
    if reg_gaussian > 0:
        head_ws += [params["wm"], params["ws"]]
        head_bs += [params["bm"], params["bs"]]
    wht = pad_t(jnp.concatenate(head_ws, axis=1), P16, Hp, mxu_dtype)
    bht = pad_t(jnp.concatenate(head_bs, axis=1), P16, 1)

    kernel = _make_qstack_kernel(cin, reg_categorical, n_cat, P16, approx_recip)

    pix = N * HW_pad
    elem = jnp.dtype(jnp.float32).itemsize
    cost = pl.CostEstimate(
        flops=2 * pix * (cin * Hp + Hp * Hp + Hp * P16),
        transcendentals=pix * P16,
        bytes_accessed=(x3.size * elem + N * P16 * HW_pad * elem
                        + (Hp * cin + Hp + Hp * Hp + Hp + P16 * Hp + P16) * elem),
    )

    out = pl.pallas_call(
        kernel,
        grid=(N, HW_pad // t),
        in_specs=[
            pl.BlockSpec((None, cin, t), lambda n, j: (n, 0, j)),   # x strip
            pl.BlockSpec((Hp, cin), lambda n, j: (0, 0)),           # w1^T
            pl.BlockSpec((Hp, 1), lambda n, j: (0, 0)),             # b1^T
            pl.BlockSpec((Hp, Hp), lambda n, j: (0, 0)),            # w2^T
            pl.BlockSpec((Hp, 1), lambda n, j: (0, 0)),             # b2^T
            pl.BlockSpec((P16, Hp), lambda n, j: (0, 0)),           # fused head W^T
            pl.BlockSpec((P16, 1), lambda n, j: (0, 0)),            # fused head b^T
        ],
        out_specs=pl.BlockSpec((None, P16, t), lambda n, j: (n, 0, j)),
        out_shape=jax.ShapeDtypeStruct((N, P16, HW_pad), jnp.float32),
        compiler_params=pltpu.CompilerParams(
            dimension_semantics=("parallel", "parallel")),
        cost_estimate=cost,
    )(x3, w1t, b1t, w2t, b2t, wht, bht)

    # Channel-major output: no transposes needed, just (small) channel slices.
    if HW_pad != HW:
        out = out[:, :, :HW]
    out = out.reshape(N, P16, H, W)

    q = {"categorical": []}
    off = 0
    for lv in reg_categorical:
        q["categorical"].append(out[:, off:off + lv])
        off += lv
    if reg_gaussian > 0:
        q["gaussian"] = {
            "mean": out[:, off:off + reg_gaussian],
            "logstd": out[:, off + reg_gaussian:off + 2 * reg_gaussian],
        }
    return q


def qstack_forward_ref(x_nchw, params, reg_categorical=(10,), reg_gaussian=2):
    """Pure-JAX f32 reference for correctness checking (matches PyTorch math)."""
    N, cin, H, W = x_nchw.shape
    x2 = jnp.transpose(x_nchw, (0, 2, 3, 1)).reshape(-1, cin).astype(jnp.float32)
    h = _leaky(x2 @ params["w1"] + params["b1"])
    h = _leaky(h @ params["w2"] + params["b2"])

    def to_nchw(a):
        return jnp.transpose(a.reshape(N, H, W, a.shape[-1]), (0, 3, 1, 2))

    q = {"categorical": []}
    for (wc, bc) in params["cat"]:
        q["categorical"].append(to_nchw(jax.nn.softmax(h @ wc + bc, axis=-1)))
    if reg_gaussian > 0:
        q["gaussian"] = {
            "mean": to_nchw(h @ params["wm"] + params["bm"]),
            "logstd": to_nchw(h @ params["ws"] + params["bs"]),
        }
    return q


if __name__ == "__main__":
    # Small, module-consistent shapes (QStack's q_input has in_dim=1).
    reg_categorical = (10, 8)
    reg_gaussian = 2
    hidden_dim = 32
    N, Cin, H, W = 2, 1, 16, 16            # 256 pixels per image

    key = jax.random.PRNGKey(0)
    kx, kp = jax.random.split(key)
    x = jax.random.normal(kx, (N, Cin, H, W), jnp.float32)
    params = init_qstack_params(kp, reg_categorical, reg_gaussian, hidden_dim, Cin)

    q_ref = qstack_forward_ref(x, params, reg_categorical, reg_gaussian)

    def check(a_tree, b_tree, atol, rtol, tag):
        for a, b in zip(jax.tree_util.tree_leaves(a_tree),
                        jax.tree_util.tree_leaves(b_tree)):
            assert a.shape == b.shape, f"{tag}: shape mismatch {a.shape} vs {b.shape}"
            assert jnp.allclose(a, b, atol=atol, rtol=rtol), f"{tag}: value mismatch"

    # f32 MXU operands; small tile so the grid has several steps.
    q32 = qstack_forward(x, params, reg_categorical, reg_gaussian,
                         tile_hw=128, use_bf16=False)
    jax.block_until_ready(q32)
    check(q32, q_ref, atol=1e-2, rtol=1e-2, tag="f32")

    # bf16 MXU operands (default fast path on all generations).
    q16 = qstack_forward(x, params, reg_categorical, reg_gaussian,
                         tile_hw=256, use_bf16=True)
    jax.block_until_ready(q16)
    check(q16, q_ref, atol=7e-2, rtol=7e-2, tag="bf16")

    print("KERNEL_OK")
</pallas_src>

<mosaic_0001>
module attributes {stable_mosaic.version = 11 : i64} {
  func.func @kernel(%arg0: i32, %arg1: i32, %arg2: memref<1x1x128xf32, #tpu.memory_space<vmem>>, %arg3: memref<128x1xf32, #tpu.memory_space<vmem>>, %arg4: memref<128x1xf32, #tpu.memory_space<vmem>>, %arg5: memref<128x128xf32, #tpu.memory_space<vmem>>, %arg6: memref<128x1xf32, #tpu.memory_space<vmem>>, %arg7: memref<24x128xf32, #tpu.memory_space<vmem>>, %arg8: memref<24x1xf32, #tpu.memory_space<vmem>>, %arg9: memref<1x24x128xf32, #tpu.memory_space<vmem>>) attributes {dimension_semantics = [#tpu.dimension_semantics<parallel>, #tpu.dimension_semantics<parallel>], iteration_bounds = array<i64: 2, 2>, scalar_prefetch = 0 : i64, scratch_operands = 0 : i64, tpu.core_type = #tpu.core_type<tc>, window_params = [{transform_indices = @transform_0, window_bounds = array<i64: 1, 1, 128>}, {pipeline_mode = #tpu.pipeline_mode<synchronous>, transform_indices = @transform_1, window_bounds = array<i64: 128, 1>}, {pipeline_mode = #tpu.pipeline_mode<synchronous>, transform_indices = @transform_2, window_bounds = array<i64: 128, 1>}, {pipeline_mode = #tpu.pipeline_mode<synchronous>, transform_indices = @transform_3, window_bounds = array<i64: 128, 128>}, {pipeline_mode = #tpu.pipeline_mode<synchronous>, transform_indices = @transform_4, window_bounds = array<i64: 128, 1>}, {pipeline_mode = #tpu.pipeline_mode<synchronous>, transform_indices = @transform_5, window_bounds = array<i64: 24, 128>}, {pipeline_mode = #tpu.pipeline_mode<synchronous>, transform_indices = @transform_6, window_bounds = array<i64: 24, 1>}, {transform_indices = @transform_7, window_bounds = array<i64: 1, 24, 128>}]} {
    %c0 = arith.constant 0 : index
    %c0_0 = arith.constant 0 : index
    %c0_1 = arith.constant 0 : index
    %0 = vector.load %arg2[%c0, %c0_0, %c0_1] : memref<1x1x128xf32, #tpu.memory_space<vmem>>, vector<1x1x128xf32>
    %1 = vector.shape_cast %0 : vector<1x1x128xf32> to vector<1x128xf32>
    %c0_2 = arith.constant 0 : index
    %c0_3 = arith.constant 0 : index
    %2 = vector.load %arg3[%c0_2, %c0_3] : memref<128x1xf32, #tpu.memory_space<vmem>>, vector<128x1xf32>
    %3 = vector.broadcast %2 : vector<128x1xf32> to vector<128x128xf32>
    %4 = vector.broadcast %1 : vector<1x128xf32> to vector<128x128xf32>
    %5 = arith.mulf %3, %4 : vector<128x128xf32>
    %c0_4 = arith.constant 0 : index
    %c0_5 = arith.constant 0 : index
    %6 = vector.load %arg4[%c0_4, %c0_5] : memref<128x1xf32, #tpu.memory_space<vmem>>, vector<128x1xf32>
    %7 = vector.broadcast %6 : vector<128x1xf32> to vector<128x128xf32>
    %8 = arith.addf %5, %7 : vector<128x128xf32>
    %cst = arith.constant 0.000000e+00 : f32
    %9 = vector.broadcast %cst : f32 to vector<128x128xf32>
    %10 = arith.cmpf ogt, %8, %9 : vector<128x128xf32>
    %cst_6 = arith.constant 2.000000e-01 : f32
    %11 = vector.broadcast %cst_6 : f32 to vector<128x128xf32>
    %12 = arith.mulf %11, %8 : vector<128x128xf32>
    %13 = arith.select %10, %8, %12 : vector<128x128xi1>, vector<128x128xf32>
    %c0_7 = arith.constant 0 : index
    %c0_8 = arith.constant 0 : index
    %14 = vector.load %arg5[%c0_7, %c0_8] : memref<128x128xf32, #tpu.memory_space<vmem>>, vector<128x128xf32>
    %cst_9 = arith.constant dense<0.000000e+00> : vector<128x128xf32>
    %15 = tpu.matmul %14, %13, %cst_9 {dimension_numbers = #tpu.dot_dimension_numbers<[1], [0], [0], [1], [0, 0, 1, 1], [], []>} : vector<128x128xf32>, vector<128x128xf32>, vector<128x128xf32> -> vector<128x128xf32>
    %c0_10 = arith.constant 0 : index
    %c0_11 = arith.constant 0 : index
    %16 = vector.load %arg6[%c0_10, %c0_11] : memref<128x1xf32, #tpu.memory_space<vmem>>, vector<128x1xf32>
    %17 = vector.broadcast %16 : vector<128x1xf32> to vector<128x128xf32>
    %18 = arith.addf %15, %17 : vector<128x128xf32>
    %cst_12 = arith.constant 0.000000e+00 : f32
    %19 = vector.broadcast %cst_12 : f32 to vector<128x128xf32>
    %20 = arith.cmpf ogt, %18, %19 : vector<128x128xf32>
    %cst_13 = arith.constant 2.000000e-01 : f32
    %21 = vector.broadcast %cst_13 : f32 to vector<128x128xf32>
    %22 = arith.mulf %21, %18 : vector<128x128xf32>
    %23 = arith.select %20, %18, %22 : vector<128x128xi1>, vector<128x128xf32>
    %c0_14 = arith.constant 0 : index
    %c0_15 = arith.constant 0 : index
    %24 = vector.load %arg7[%c0_14, %c0_15] : memref<24x128xf32, #tpu.memory_space<vmem>>, vector<24x128xf32>
    %cst_16 = arith.constant dense<0.000000e+00> : vector<24x128xf32>
    %25 = tpu.matmul %24, %23, %cst_16 {dimension_numbers = #tpu.dot_dimension_numbers<[1], [0], [0], [1], [0, 0, 1, 1], [], []>} : vector<24x128xf32>, vector<128x128xf32>, vector<24x128xf32> -> vector<24x128xf32>
    %c0_17 = arith.constant 0 : index
    %c0_18 = arith.constant 0 : index
    %26 = vector.load %arg8[%c0_17, %c0_18] : memref<24x1xf32, #tpu.memory_space<vmem>>, vector<24x1xf32>
    %27 = vector.broadcast %26 : vector<24x1xf32> to vector<24x128xf32>
    %28 = arith.addf %25, %27 : vector<24x128xf32>
    %29 = tpu.iota {dimensions = array<i32: 0>} : vector<24x1xi32>
    %c18_i32 = arith.constant 18 : i32
    %30 = vector.broadcast %c18_i32 : i32 to vector<24x1xi32>
    %31 = arith.cmpi slt, %29, %30 : vector<24x1xi32>
    %c0_i32 = arith.constant 0 : i32
    %32 = vector.broadcast %c0_i32 : i32 to vector<24x1xi32>
    %33 = arith.cmpi sge, %29, %32 : vector<24x1xi32>
    %c10_i32 = arith.constant 10 : i32
    %34 = vector.broadcast %c10_i32 : i32 to vector<24x1xi32>
    %35 = arith.cmpi slt, %29, %34 : vector<24x1xi32>
    %36 = arith.andi %33, %35 : vector<24x1xi1>
    %cst_19 = arith.constant 0xFF800000 : f32
    %37 = vector.shape_cast %36 : vector<24x1xi1> to vector<24x1xi1>
    %38 = vector.broadcast %37 : vector<24x1xi1> to vector<24x128xi1>
    %39 = vector.broadcast %cst_19 : f32 to vector<24x128xf32>
    %40 = arith.select %38, %28, %39 : vector<24x128xi1>, vector<24x128xf32>
    %cst_20 = arith.constant dense<0xFF800000> : vector<128xf32>
    %41 = vector.multi_reduction <maximumf>, %40, %cst_20 [0] : vector<24x128xf32> to vector<128xf32>
    %42 = vector.shape_cast %41 : vector<128xf32> to vector<1x128xf32>
    %43 = vector.shape_cast %36 : vector<24x1xi1> to vector<24x1xi1>
    %44 = vector.broadcast %43 : vector<24x1xi1> to vector<24x128xi1>
    %45 = vector.shape_cast %42 : vector<1x128xf32> to vector<1x128xf32>
    %46 = vector.broadcast %45 : vector<1x128xf32> to vector<24x128xf32>
    %47 = arith.select %44, %46, %28 : vector<24x128xi1>, vector<24x128xf32>
    %c10_i32_21 = arith.constant 10 : i32
    %48 = vector.broadcast %c10_i32_21 : i32 to vector<24x1xi32>
    %49 = arith.cmpi sge, %29, %48 : vector<24x1xi32>
    %c18_i32_22 = arith.constant 18 : i32
    %50 = vector.broadcast %c18_i32_22 : i32 to vector<24x1xi32>
    %51 = arith.cmpi slt, %29, %50 : vector<24x1xi32>
    %52 = arith.andi %49, %51 : vector<24x1xi1>
    %cst_23 = arith.constant 0xFF800000 : f32
    %53 = vector.shape_cast %52 : vector<24x1xi1> to vector<24x1xi1>
    %54 = vector.broadcast %53 : vector<24x1xi1> to vector<24x128xi1>
    %55 = vector.broadcast %cst_23 : f32 to vector<24x128xf32>
    %56 = arith.select %54, %28, %55 : vector<24x128xi1>, vector<24x128xf32>
    %cst_24 = arith.constant dense<0xFF800000> : vector<128xf32>
    %57 = vector.multi_reduction <maximumf>, %56, %cst_24 [0] : vector<24x128xf32> to vector<128xf32>
    %58 = vector.shape_cast %57 : vector<128xf32> to vector<1x128xf32>
    %59 = vector.shape_cast %52 : vector<24x1xi1> to vector<24x1xi1>
    %60 = vector.broadcast %59 : vector<24x1xi1> to vector<24x128xi1>
    %61 = vector.shape_cast %58 : vector<1x128xf32> to vector<1x128xf32>
    %62 = vector.broadcast %61 : vector<1x128xf32> to vector<24x128xf32>
    %63 = arith.select %60, %62, %47 : vector<24x128xi1>, vector<24x128xf32>
    %64 = arith.subf %28, %63 : vector<24x128xf32>
    %65 = math.exp %64 : vector<24x128xf32>
    %cst_25 = arith.constant 1.000000e+00 : f32
    %66 = vector.broadcast %cst_25 : f32 to vector<24x128xf32>
    %c0_i32_26 = arith.constant 0 : i32
    %67 = vector.broadcast %c0_i32_26 : i32 to vector<24x1xi32>
    %68 = arith.cmpi sge, %29, %67 : vector<24x1xi32>
    %c10_i32_27 = arith.constant 10 : i32
    %69 = vector.broadcast %c10_i32_27 : i32 to vector<24x1xi32>
    %70 = arith.cmpi slt, %29, %69 : vector<24x1xi32>
    %71 = arith.andi %68, %70 : vector<24x1xi1>
    %cst_28 = arith.constant 0.000000e+00 : f32
    %72 = vector.shape_cast %71 : vector<24x1xi1> to vector<24x1xi1>
    %73 = vector.broadcast %72 : vector<24x1xi1> to vector<24x128xi1>
    %74 = vector.broadcast %cst_28 : f32 to vector<24x128xf32>
    %75 = arith.select %73, %65, %74 : vector<24x128xi1>, vector<24x128xf32>
    %cst_29 = arith.constant dense<0.000000e+00> : vector<128xf32>
    %76 = vector.multi_reduction <add>, %75, %cst_29 [0] : vector<24x128xf32> to vector<128xf32>
    %77 = vector.shape_cast %76 : vector<128xf32> to vector<1x128xf32>
    %78 = tpu.reciprocal %77 {approx = true} : vector<1x128xf32> -> vector<1x128xf32>
    %79 = vector.shape_cast %71 : vector<24x1xi1> to vector<24x1xi1>
    %80 = vector.broadcast %79 : vector<24x1xi1> to vector<24x128xi1>
    %81 = vector.shape_cast %78 : vector<1x128xf32> to vector<1x128xf32>
    %82 = vector.broadcast %81 : vector<1x128xf32> to vector<24x128xf32>
    %83 = arith.select %80, %82, %66 : vector<24x128xi1>, vector<24x128xf32>
    %c10_i32_30 = arith.constant 10 : i32
    %84 = vector.broadcast %c10_i32_30 : i32 to vector<24x1xi32>
    %85 = arith.cmpi sge, %29, %84 : vector<24x1xi32>
    %c18_i32_31 = arith.constant 18 : i32
    %86 = vector.broadcast %c18_i32_31 : i32 to vector<24x1xi32>
    %87 = arith.cmpi slt, %29, %86 : vector<24x1xi32>
    %88 = arith.andi %85, %87 : vector<24x1xi1>
    %cst_32 = arith.constant 0.000000e+00 : f32
    %89 = vector.shape_cast %88 : vector<24x1xi1> to vector<24x1xi1>
    %90 = vector.broadcast %89 : vector<24x1xi1> to vector<24x128xi1>
    %91 = vector.broadcast %cst_32 : f32 to vector<24x128xf32>
    %92 = arith.select %90, %65, %91 : vector<24x128xi1>, vector<24x128xf32>
    %cst_33 = arith.constant dense<0.000000e+00> : vector<128xf32>
    %93 = vector.multi_reduction <add>, %92, %cst_33 [0] : vector<24x128xf32> to vector<128xf32>
    %94 = vector.shape_cast %93 : vector<128xf32> to vector<1x128xf32>
    %95 = tpu.reciprocal %94 {approx = true} : vector<1x128xf32> -> vector<1x128xf32>
    %96 = vector.shape_cast %88 : vector<24x1xi1> to vector<24x1xi1>
    %97 = vector.broadcast %96 : vector<24x1xi1> to vector<24x128xi1>
    %98 = vector.shape_cast %95 : vector<1x128xf32> to vector<1x128xf32>
    %99 = vector.broadcast %98 : vector<1x128xf32> to vector<24x128xf32>
    %100 = arith.select %97, %99, %83 : vector<24x128xi1>, vector<24x128xf32>
    %101 = arith.mulf %65, %100 : vector<24x128xf32>
    %102 = vector.shape_cast %31 : vector<24x1xi1> to vector<24x1xi1>
    %103 = vector.broadcast %102 : vector<24x1xi1> to vector<24x128xi1>
    %104 = arith.select %103, %101, %28 : vector<24x128xi1>, vector<24x128xf32>
    %c0_34 = arith.constant 0 : index
    %c0_35 = arith.constant 0 : index
    %c0_36 = arith.constant 0 : index
    %105 = vector.load %arg9[%c0_34, %c0_35, %c0_36] : memref<1x24x128xf32, #tpu.memory_space<vmem>>, vector<1x24x128xf32>
    %106 = vector.shape_cast %105 : vector<1x24x128xf32> to vector<24x128xf32>
    %107 = vector.shape_cast %104 : vector<24x128xf32> to vector<1x24x128xf32>
    tpu.vector_store %arg9[%c0_34, %c0_35, %c0_36], %107 {strides = array<i32>} : memref<1x24x128xf32, #tpu.memory_space<vmem>>, vector<1x24x128xf32>,
    return
  }
  func.func @transform_0(%arg0: i32, %arg1: i32) -> (i32, i32, i32) {
    %c0_i32 = arith.constant 0 : i32
    %c0_i32_0 = arith.constant 0 : i32
    return %arg0, %c0_i32, %arg1 : i32, i32, i32
  }
  func.func @transform_1(%arg0: i32, %arg1: i32) -> (i32, i32) {
    %c0_i32 = arith.constant 0 : i32
    %c0_i32_0 = arith.constant 0 : i32
    %c0_i32_1 = arith.constant 0 : i32
    return %c0_i32, %c0_i32_0 : i32, i32
  }
  func.func @transform_2(%arg0: i32, %arg1: i32) -> (i32, i32) {
    %c0_i32 = arith.constant 0 : i32
    %c0_i32_0 = arith.constant 0 : i32
    %c0_i32_1 = arith.constant 0 : i32
    return %c0_i32, %c0_i32_0 : i32, i32
  }
  func.func @transform_3(%arg0: i32, %arg1: i32) -> (i32, i32) {
    %c0_i32 = arith.constant 0 : i32
    %c0_i32_0 = arith.constant 0 : i32
    %c0_i32_1 = arith.constant 0 : i32
    return %c0_i32, %c0_i32_0 : i32, i32
  }
  func.func @transform_4(%arg0: i32, %arg1: i32) -> (i32, i32) {
    %c0_i32 = arith.constant 0 : i32
    %c0_i32_0 = arith.constant 0 : i32
    %c0_i32_1 = arith.constant 0 : i32
    return %c0_i32, %c0_i32_0 : i32, i32
  }
  func.func @transform_5(%arg0: i32, %arg1: i32) -> (i32, i32) {
    %c0_i32 = arith.constant 0 : i32
    %c0_i32_0 = arith.constant 0 : i32
    %c0_i32_1 = arith.constant 0 : i32
    return %c0_i32, %c0_i32_0 : i32, i32
  }
  func.func @transform_6(%arg0: i32, %arg1: i32) -> (i32, i32) {
    %c0_i32 = arith.constant 0 : i32
    %c0_i32_0 = arith.constant 0 : i32
    %c0_i32_1 = arith.constant 0 : i32
    return %c0_i32, %c0_i32_0 : i32, i32
  }
  func.func @transform_7(%arg0: i32, %arg1: i32) -> (i32, i32, i32) {
    %c0_i32 = arith.constant 0 : i32
    %c0_i32_0 = arith.constant 0 : i32
    return %arg0, %c0_i32, %arg1 : i32, i32, i32
  }
}

</mosaic_0001>

<llo_original>
// kernel: tpu_custom_call.1
$region0: #{tpu_custom_call.1}
  #allocation0 [shape = 'u32[]', space=smem, size = 0x4, offset = 0x4, fixed_abs, tag = 'smem constant byte address 0x4 - core index']
  #allocation1 [shape = 'u32[72,128]{1,0:T(1,128)}', space=vmem, size = 0x9000, scoped, tag = 'internal scratch']
  %s0 = inlined_call_operand.vmem [shape: f32[2,1,256], index: 0, kind: input, shape index: {}]
  %s1 = inlined_call_operand.vmem [shape: f32[128,1], index: 1, kind: input, shape index: {}]
  %s2 = inlined_call_operand.vmem [shape: f32[128,1], index: 2, kind: input, shape index: {}]
  %s3 = inlined_call_operand.vmem [shape: f32[128,128], index: 3, kind: input, shape index: {}]
  %s4 = inlined_call_operand.vmem [shape: f32[128,1], index: 4, kind: input, shape index: {}]
  %s5 = inlined_call_operand.vmem [shape: f32[24,128], index: 5, kind: input, shape index: {}]
  %s6 = inlined_call_operand.vmem [shape: f32[24,1], index: 6, kind: input, shape index: {}]
  %s7 = inlined_call_operand.hbm [shape: f32[2,24,256], index: 7, kind: output, shape index: {}]
  %s8 = sld [smem:[#allocation0]]
  $region61: #{tpu_custom_call.1} parent=0
    _
  %s10 = ssub.s32 1, %s8
  %s11 = scalar_select 0, %s10, %s8
  $region1: #{tpu_custom_call.1} parent=0
    #allocation2 [shape = 'u8[24576]{0}', space=vmem, size = 0x6000, scoped, tag = 'output window, operand 0']
    #allocation3 [shape = 's32[2]{0}', space=sflag, size = 0x8, scoped, tag = 'scoped memory for tpu_custom_call.1']
    %12 = vsyncpa [#allocation3], 0
    %s13 = scalar_lea.sflag [#allocation3], 1
    %14 = vsyncpa %s13, 0
    loop: start=0, step=1, limit=6
    $region2: #{tpu_custom_call.1} parent=1 // loop_pre_header
      _
    $region3: #{tpu_custom_call.1} parent=1 // loop_header
      %s16 = sphi 0, %s20
      %p17 = scmp.ge.s32.totalorder %s16, 6
      %s23 = sphi 0, %s35
      %s24 = sphi 0, %s31
      %s25 = sphi 0, %s23
      %s26 = sphi 0, %s24
      %s27 = sphi 0, %s25
      %s28 = sphi 0, %s26
      %s40 = sphi 0, %s42
      %s43 = sphi 0, %s40
      %s44 = sphi 0, %s43
      %s60 = sphi 0, %s44
      %s64 = sphi 0, %s64
      %s66 = sphi 0, %s64
      %s67 = sphi 0, %s66
      %s81 = sphi 0, %s67
      %s85 = sphi 0, %s85
      %s87 = sphi 0, %s85
      %s88 = sphi 0, %s87
      %s102 = sphi 0, %s88
      %s106 = sphi 0, %s106
      %s108 = sphi 0, %s106
      %s109 = sphi 0, %s108
      %s123 = sphi 0, %s109
      %s127 = sphi 0, %s127
      %s129 = sphi 0, %s127
      %s130 = sphi 0, %s129
      %s144 = sphi 0, %s130
      %s148 = sphi 0, %s148
      %s150 = sphi 0, %s148
      %s151 = sphi 0, %s150
      %s165 = sphi 0, %s151
      %s169 = sphi 0, %s169
      %s171 = sphi 0, %s169
      %s172 = sphi 0, %s171
      %s186 = sphi 0, %s172
      %s194 = sphi 0, %s196
      %s197 = sphi 0, %s194
      %s198 = sphi 0, %s197
      %s214 = sphi 0, %s198
    $region4: #{tpu_custom_call.1} parent=1 // loop_header_branch
      %19 = sbr.rel (%p17) target = $region8
    $region5: #{tpu_custom_call.1} parent=1 // loop_body
      %s21 = ssub.s32 %s16, 1
      %s22 = ssub.s32 %s16, 2
      %s29 = sadd.s32 1, %s24
      %p30 = scmp.ge.s32.totalorder %s29, 2
      %s31 = scalar_select %p30, 0, %s29
      %s32 = sadd.s32 1, %s23
      %s33 = scalar_select %p30, %s32, %s23
      %p34 = scmp.ge.s32.totalorder %s33, 2
      %s35 = scalar_select %p34, 0, %s33
      %s36 = ssub.s32 %s23, %s35
      %s37 = ssub.s32 %s24, %s31
      %s38 = sor.u32 %s36, %s37
      %p39 = scmp.eq.s32.totalorder %s38, 0
      %s41 = sadd.s32 %s40, 1
      %s42 = scalar_select %p39, %s40, %s41
      %p45 = pneg %p39
      %p46 = scmp.eq.s32.totalorder %s16, 3
      %p47 = por %p45, %p46
      %p48 = scmp.ne.s32.totalorder %s40, %s43
      %p49 = scmp.eq.s32.totalorder %s16, 0
      %p50 = por %p48, %p49
      %p51 = scmp.ne.s32.totalorder %s40, %s43
      %p52 = scmp.eq.s32.totalorder %s21, 3
      %p53 = por %p51, %p52
      %p54 = scmp.ne.s32.totalorder %s43, %s44
      %p55 = scmp.eq.s32.totalorder %s21, 0
      %p56 = por %p54, %p55
      %p57 = scmp.ne.s32.totalorder %s43, %s44
      %p58 = scmp.eq.s32.totalorder %s22, 3
      %p59 = por %p57, %p58
      %p61 = scmp.ne.s32.totalorder %s44, %s60
      %p62 = scmp.eq.s32.totalorder %s22, 0
      %p63 = por %p61, %p62
      %s65 = sadd.s32 %s64, 1
      %p68 = scmp.eq.s32.totalorder %s16, 3
      %p69 = scmp.ne.s32.totalorder %s64, %s66
      %p70 = scmp.eq.s32.totalorder %s16, 0
      %p71 = por %p69, %p70
      %p72 = scmp.ne.s32.totalorder %s64, %s66
      %p73 = scmp.eq.s32.totalorder %s21, 3
      %p74 = por %p72, %p73
      %p75 = scmp.ne.s32.totalorder %s66, %s67
      %p76 = scmp.eq.s32.totalorder %s21, 0
      %p77 = por %p75, %p76
      %p78 = scmp.ne.s32.totalorder %s66, %s67
      %p79 = scmp.eq.s32.totalorder %s22, 3
      %p80 = por %p78, %p79
      %p82 = scmp.ne.s32.totalorder %s67, %s81
      %p83 = scmp.eq.s32.totalorder %s22, 0
      %p84 = por %p82, %p83
      %s86 = sadd.s32 %s85, 1
      %p89 = scmp.eq.s32.totalorder %s16, 3
      %p90 = scmp.ne.s32.totalorder %s85, %s87
      %p91 = scmp.eq.s32.totalorder %s16, 0
      %p92 = por %p90, %p91
      %p93 = scmp.ne.s32.totalorder %s85, %s87
      %p94 = scmp.eq.s32.totalorder %s21, 3
      %p95 = por %p93, %p94
      %p96 = scmp.ne.s32.totalorder %s87, %s88
      %p97 = scmp.eq.s32.totalorder %s21, 0
      %p98 = por %p96, %p97
      %p99 = scmp.ne.s32.totalorder %s87, %s88
      %p100 = scmp.eq.s32.totalorder %s22, 3
      %p101 = por %p99, %p100
      %p103 = scmp.ne.s32.totalorder %s88, %s102
      %p104 = scmp.eq.s32.totalorder %s22, 0
      %p105 = por %p103, %p104
      %s107 = sadd.s32 %s106, 1
      %p110 = scmp.eq.s32.totalorder %s16, 3
      %p111 = scmp.ne.s32.totalorder %s106, %s108
      %p112 = scmp.eq.s32.totalorder %s16, 0
      %p113 = por %p111, %p112
      %p114 = scmp.ne.s32.totalorder %s106, %s108
      %p115 = scmp.eq.s32.totalorder %s21, 3
      %p116 = por %p114, %p115
      %p117 = scmp.ne.s32.totalorder %s108, %s109
      %p118 = scmp.eq.s32.totalorder %s21, 0
      %p119 = por %p117, %p118
      %p120 = scmp.ne.s32.totalorder %s108, %s109
      %p121 = scmp.eq.s32.totalorder %s22, 3
      %p122 = por %p120, %p121
      %p124 = scmp.ne.s32.totalorder %s109, %s123
      %p125 = scmp.eq.s32.totalorder %s22, 0
      %p126 = por %p124, %p125
      %s128 = sadd.s32 %s127, 1
      %p131 = scmp.eq.s32.totalorder %s16, 3
      %p132 = scmp.ne.s32.totalorder %s127, %s129
      %p133 = scmp.eq.s32.totalorder %s16, 0
      %p134 = por %p132, %p133
      %p135 = scmp.ne.s32.totalorder %s127, %s129
      %p136 = scmp.eq.s32.totalorder %s21, 3
      %p137 = por %p135, %p136
      %p138 = scmp.ne.s32.totalorder %s129, %s130
      %p139 = scmp.eq.s32.totalorder %s21, 0
      %p140 = por %p138, %p139
      %p141 = scmp.ne.s32.totalorder %s129, %s130
      %p142 = scmp.eq.s32.totalorder %s22, 3
      %p143 = por %p141, %p142
      %p145 = scmp.ne.s32.totalorder %s130, %s144
      %p146 = scmp.eq.s32.totalorder %s22, 0
      %p147 = por %p145, %p146
      %s149 = sadd.s32 %s148, 1
      %p152 = scmp.eq.s32.totalorder %s16, 3
      %p153 = scmp.ne.s32.totalorder %s148, %s150
      %p154 = scmp.eq.s32.totalorder %s16, 0
      %p155 = por %p153, %p154
      %p156 = scmp.ne.s32.totalorder %s148, %s150
      %p157 = scmp.eq.s32.totalorder %s21, 3
      %p158 = por %p156, %p157
      %p159 = scmp.ne.s32.totalorder %s150, %s151
      %p160 = scmp.eq.s32.totalorder %s21, 0
      %p161 = por %p159, %p160
      %p162 = scmp.ne.s32.totalorder %s150, %s151
      %p163 = scmp.eq.s32.totalorder %s22, 3
      %p164 = por %p162, %p163
      %p166 = scmp.ne.s32.totalorder %s151, %s165
      %p167 = scmp.eq.s32.totalorder %s22, 0
      %p168 = por %p166, %p167
      %s170 = sadd.s32 %s169, 1
      %p173 = scmp.eq.s32.totalorder %s16, 3
      %p174 = scmp.ne.s32.totalorder %s169, %s171
      %p175 = scmp.eq.s32.totalorder %s16, 0
      %p176 = por %p174, %p175
      %p177 = scmp.ne.s32.totalorder %s169, %s171
      %p178 = scmp.eq.s32.totalorder %s21, 3
      %p179 = por %p177, %p178
      %p180 = scmp.ne.s32.totalorder %s171, %s172
      %p181 = scmp.eq.s32.totalorder %s21, 0
      %p182 = por %p180, %p181
      %p183 = scmp.ne.s32.totalorder %s171, %s172
      %p184 = scmp.eq.s32.totalorder %s22, 3
      %p185 = por %p183, %p184
      %p187 = scmp.ne.s32.totalorder %s172, %s186
      %p188 = scmp.eq.s32.totalorder %s22, 0
      %p189 = por %p187, %p188
      %s190 = ssub.s32 %s23, %s35
      %s191 = ssub.s32 %s24, %s31
      %s192 = sor.u32 %s190, %s191
      %p193 = scmp.eq.s32.totalorder %s192, 0
      %s195 = sadd.s32 %s194, 1
      %s196 = scalar_select %p193, %s194, %s195
      %p199 = pneg %p193
      %p200 = scmp.eq.s32.totalorder %s16, 3
      %p201 = por %p199, %p200
      %p202 = scmp.ne.s32.totalorder %s194, %s197
      %p203 = scmp.eq.s32.totalorder %s16, 0
      %p204 = por %p202, %p203
      %p205 = scmp.ne.s32.totalorder %s194, %s197
      %p206 = scmp.eq.s32.totalorder %s21, 3
      %p207 = por %p205, %p206
      %p208 = scmp.ne.s32.totalorder %s197, %s198
      %p209 = scmp.eq.s32.totalorder %s21, 0
      %p210 = por %p208, %p209
      %p211 = scmp.ne.s32.totalorder %s197, %s198
      %p212 = scmp.eq.s32.totalorder %s22, 3
      %p213 = por %p211, %p212
      %p215 = scmp.ne.s32.totalorder %s198, %s214
      %p216 = scmp.eq.s32.totalorder %s22, 0
      %p217 = por %p215, %p216
      %p218 = scmp.le.s32.totalorder 1, %s16
      %p219 = scmp.lt.s32.totalorder %s16, 5
      %p220 = pnand %p218, %p219
      %p221 = pneg %p220
      // Predicated region
      $region9: #{tpu_custom_call.1} parent=5 // pred_check
        _
      $region10: #{tpu_custom_call.1} parent=5 // pred_check_branch
        %223 = sbr.rel (%p220) target = $region12
      $region11: #{tpu_custom_call.1} parent=5 // pred_region
        %s224 = ssub.s32 %s16, 1
        // Predicated region
        $region13: #{tpu_custom_call.1} parent=11 // pred_check
          %p225 = pneg %p77
        $region14: #{tpu_custom_call.1} parent=11 // pred_check_branch
          %227 = sbr.rel (%p225) target = $region16
        $region15: #{tpu_custom_call.1} parent=11 // pred_region
          _
        $region16: #{tpu_custom_call.1} parent=11 // pred_fallthru
          _
        // Predicated region
        $region17: #{tpu_custom_call.1} parent=11 // pred_check
          %p228 = pneg %p98
        $region18: #{tpu_custom_call.1} parent=11 // pred_check_branch
          %230 = sbr.rel (%p228) target = $region20
        $region19: #{tpu_custom_call.1} parent=11 // pred_region
          _
        $region20: #{tpu_custom_call.1} parent=11 // pred_fallthru
          _
        // Predicated region
        $region21: #{tpu_custom_call.1} parent=11 // pred_check
          %p231 = pneg %p119
        $region22: #{tpu_custom_call.1} parent=11 // pred_check_branch
          %233 = sbr.rel (%p231) target = $region24
        $region23: #{tpu_custom_call.1} parent=11 // pred_region
          _
        $region24: #{tpu_custom_call.1} parent=11 // pred_fallthru
          _
        // Predicated region
        $region25: #{tpu_custom_call.1} parent=11 // pred_check
          %p234 = pneg %p140
        $region26: #{tpu_custom_call.1} parent=11 // pred_check_branch
          %236 = sbr.rel (%p234) target = $region28
        $region27: #{tpu_custom_call.1} parent=11 // pred_region
          _
        $region28: #{tpu_custom_call.1} parent=11 // pred_fallthru
          _
        // Predicated region
        $region29: #{tpu_custom_call.1} parent=11 // pred_check
          %p237 = pneg %p161
        $region30: #{tpu_custom_call.1} parent=11 // pred_check_branch
          %239 = sbr.rel (%p237) target = $region32
        $region31: #{tpu_custom_call.1} parent=11 // pred_region
          _
        $region32: #{tpu_custom_call.1} parent=11 // pred_fallthru
          _
        // Predicated region
        $region33: #{tpu_custom_call.1} parent=11 // pred_check
          %p240 = pneg %p182
        $region34: #{tpu_custom_call.1} parent=11 // pred_check_branch
          %242 = sbr.rel (%p240) target = $region36
        $region35: #{tpu_custom_call.1} parent=11 // pred_region
          _
        $region36: #{tpu_custom_call.1} parent=11 // pred_fallthru
          _
      $region12: #{tpu_custom_call.1} parent=5 // pred_fallthru
        _
      %p243 = scmp.lt.s32.totalorder %s16, 4
      // Predicated region
      $region37: #{tpu_custom_call.1} parent=5 // pred_check
        %p244 = pneg %p243
      $region38: #{tpu_custom_call.1} parent=5 // pred_check_branch
        %246 = sbr.rel (%p244) target = $region40
      $region39: #{tpu_custom_call.1} parent=5 // pred_region
        // Predicated region
        $region41: #{tpu_custom_call.1} parent=39 // pred_check
          %p247 = pneg %p50
        $region42: #{tpu_custom_call.1} parent=39 // pred_check_branch
          %249 = sbr.rel (%p247) target = $region44
        $region43: #{tpu_custom_call.1} parent=39 // pred_region
          %p250 = scmp.lt.s32.totalorder %s23, 1
          %s251 = scalar_select %p250, %s23, 1
          %p252 = scmp.lt.s32.totalorder %s24, 1
          %s253 = scalar_select %p252, %s24, 1
          %s254 = smul.addr %s251, 2
          %s255 = sadd.s32 %s253, %s254
          %s256 = scalar_lea.vmem %s0, %s255
        $region44: #{tpu_custom_call.1} parent=39 // pred_fallthru
          _
      $region40: #{tpu_custom_call.1} parent=5 // pred_fallthru
        _
      %p257 = scmp.le.s32.totalorder 1, %s16
      %p258 = scmp.lt.s32.totalorder %s16, 5
      %p259 = pnand %p257, %p258
      %p260 = pneg %p259
      // Predicated region
      $region45: #{tpu_custom_call.1} parent=5 // pred_check
        _
      $region46: #{tpu_custom_call.1} parent=5 // pred_check_branch
        %262 = sbr.rel (%p259) target = $region48
      $region47: #{tpu_custom_call.1} parent=5 // pred_region
        %s263 = ssub.s32 %s16, 1
        %p264 = scmp.lt.s32.totalorder %s25, 1
        %s265 = scalar_select %p264, %s25, 1
        %p266 = scmp.lt.s32.totalorder %s26, 1
        %s267 = scalar_select %p266, %s26, 1
        %s268 = smul.addr %s265, 2
        %s269 = sadd.s32 %s267, %s268
        %s270 = scalar_lea.vmem %s0, %s269
        %p271 = pneg %p56
        %p272 = pneg %p53
        %p273 = pneg %p77
        %p274 = pneg %p74
        %p275 = pneg %p98
        %p276 = pneg %p95
        %p277 = pneg %p119
        %p278 = pneg %p116
        %p279 = pneg %p140
        %p280 = pneg %p137
        %p281 = pneg %p161
        %p282 = pneg %p158
        %p283 = pneg %p182
        %p284 = pneg %p179
        %p285 = pneg %p210
        %p286 = pneg %p207
        %s287 = sand.u32 %s197, 1
        %s288 = scalar_lea.sflag [#allocation3], %s287
        %s289 = sand.u32 %s197, 1
        %s290 = smul.addr %s289, 24
        %s291 = scalar_lea.vmem [#allocation2], %s290
        %p292 = scmp.lt.s32.totalorder %s25, 1
        %s293 = scalar_select %p292, %s25, 1
        %p294 = scmp.lt.s32.totalorder %s26, 1
        %s295 = scalar_select %p294, %s26, 1
        %s296 = smul.addr %s293, 2
        %s297 = sadd.s32 %s295, %s296
        %s298 = scalar_lea.vmem %s0, %s297
        %v299 = vld [vmem:[%s298] sm:$0x1]
        %v300 = vld [vmem:[%s1] sm:$0xff]
        %v301 = vld [vmem:[%s1 + $0x8] sm:$0xff]
        %v302 = vld [vmem:[%s1 + $0x10] sm:$0xff]
        %v303 = vld [vmem:[%s1 + $0x18] sm:$0xff]
        %v304 = vld [vmem:[%s1 + $0x20] sm:$0xff]
        %v305 = vld [vmem:[%s1 + $0x28] sm:$0xff]
        %v306 = vld [vmem:[%s1 + $0x30] sm:$0xff]
        %v307 = vld [vmem:[%s1 + $0x38] sm:$0xff]
        %v308 = vld [vmem:[%s1 + $0x40] sm:$0xff]
        %v309 = vld [vmem:[%s1 + $0x48] sm:$0xff]
        %v310 = vld [vmem:[%s1 + $0x50] sm:$0xff]
        %v311 = vld [vmem:[%s1 + $0x58] sm:$0xff]
        %v312 = vld [vmem:[%s1 + $0x60] sm:$0xff]
        %v313 = vld [vmem:[%s1 + $0x68] sm:$0xff]
        %v314 = vld [vmem:[%s1 + $0x70] sm:$0xff]
        %v315 = vld [vmem:[%s1 + $0x78] sm:$0xff]
        %317 = vset.pattern.permute.xlu0 0
        %318 = vperm.xlu0 %317, %v300
        %v319 = vpop.permute.xlu0 %318
        %322 = vset.pattern.permute.xlu0 0
        %323 = vperm.xlu0 %322, %v301
        %v324 = vpop.permute.xlu0 %323
        %327 = vset.pattern.permute.xlu0 0
        %328 = vperm.xlu0 %327, %v302
        %v329 = vpop.permute.xlu0 %328
        %332 = vset.pattern.permute.xlu0 0
        %333 = vperm.xlu0 %332, %v303
        %v334 = vpop.permute.xlu0 %333
        %337 = vset.pattern.permute.xlu0 0
        %338 = vperm.xlu0 %337, %v304
        %v339 = vpop.permute.xlu0 %338
        %342 = vset.pattern.permute.xlu0 0
        %343 = vperm.xlu0 %342, %v305
        %v344 = vpop.permute.xlu0 %343
        %347 = vset.pattern.permute.xlu0 0
        %348 = vperm.xlu0 %347, %v306
        %v349 = vpop.permute.xlu0 %348
        %352 = vset.pattern.permute.xlu0 0
        %353 = vperm.xlu0 %352, %v307
        %v354 = vpop.permute.xlu0 %353
        %357 = vset.pattern.permute.xlu0 0
        %358 = vperm.xlu0 %357, %v308
        %v359 = vpop.permute.xlu0 %358
        %362 = vset.pattern.permute.xlu0 0
        %363 = vperm.xlu0 %362, %v309
        %v364 = vpop.permute.xlu0 %363
        %367 = vset.pattern.permute.xlu0 0
        %368 = vperm.xlu0 %367, %v310
        %v369 = vpop.permute.xlu0 %368
        %372 = vset.pattern.permute.xlu0 0
        %373 = vperm.xlu0 %372, %v311
        %v374 = vpop.permute.xlu0 %373
        %377 = vset.pattern.permute.xlu0 0
        %378 = vperm.xlu0 %377, %v312
        %v379 = vpop.permute.xlu0 %378
        %382 = vset.pattern.permute.xlu0 0
        %383 = vperm.xlu0 %382, %v313
        %v384 = vpop.permute.xlu0 %383
        %387 = vset.pattern.permute.xlu0 0
        %388 = vperm.xlu0 %387, %v314
        %v389 = vpop.permute.xlu0 %388
        %392 = vset.pattern.permute.xlu0 0
        %393 = vperm.xlu0 %392, %v315
        %v394 = vpop.permute.xlu0 %393
        %v397 = vperm.slane %v299, 0
        %v399 = vmul.f32 %v319, %v397
        %v400 = vmul.f32 %v324, %v397
        %v401 = vmul.f32 %v329, %v397
        %v402 = vmul.f32 %v334, %v397
        %v403 = vmul.f32 %v339, %v397
        %v404 = vmul.f32 %v344, %v397
        %v405 = vmul.f32 %v349, %v397
        %v406 = vmul.f32 %v354, %v397
        %v407 = vmul.f32 %v359, %v397
        %v408 = vmul.f32 %v364, %v397
        %v409 = vmul.f32 %v369, %v397
        %v410 = vmul.f32 %v374, %v397
        %v411 = vmul.f32 %v379, %v397
        %v412 = vmul.f32 %v384, %v397
        %v413 = vmul.f32 %v389, %v397
        %v414 = vmul.f32 %v394, %v397
        %v415 = vld [vmem:[%s2] sm:$0xff]
        %v416 = vld [vmem:[%s2 + $0x8] sm:$0xff]
        %v417 = vld [vmem:[%s2 + $0x10] sm:$0xff]
        %v418 = vld [vmem:[%s2 + $0x18] sm:$0xff]
        %v419 = vld [vmem:[%s2 + $0x20] sm:$0xff]
        %v420 = vld [vmem:[%s2 + $0x28] sm:$0xff]
        %v421 = vld [vmem:[%s2 + $0x30] sm:$0xff]
        %v422 = vld [vmem:[%s2 + $0x38] sm:$0xff]
        %v423 = vld [vmem:[%s2 + $0x40] sm:$0xff]
        %v424 = vld [vmem:[%s2 + $0x48] sm:$0xff]
        %v425 = vld [vmem:[%s2 + $0x50] sm:$0xff]
        %v426 = vld [vmem:[%s2 + $0x58] sm:$0xff]
        %v427 = vld [vmem:[%s2 + $0x60] sm:$0xff]
        %v428 = vld [vmem:[%s2 + $0x68] sm:$0xff]
        %v429 = vld [vmem:[%s2 + $0x70] sm:$0xff]
        %v430 = vld [vmem:[%s2 + $0x78] sm:$0xff]
        %432 = vset.pattern.permute.xlu0 0
        %433 = vperm.xlu0 %432, %v415
        %v434 = vpop.permute.xlu0 %433
        %437 = vset.pattern.permute.xlu0 0
        %438 = vperm.xlu0 %437, %v416
        %v439 = vpop.permute.xlu0 %438
        %442 = vset.pattern.permute.xlu0 0
        %443 = vperm.xlu0 %442, %v417
        %v444 = vpop.permute.xlu0 %443
        %447 = vset.pattern.permute.xlu0 0
        %448 = vperm.xlu0 %447, %v418
        %v449 = vpop.permute.xlu0 %448
        %452 = vset.pattern.permute.xlu0 0
        %453 = vperm.xlu0 %452, %v419
        %v454 = vpop.permute.xlu0 %453
        %457 = vset.pattern.permute.xlu0 0
        %458 = vperm.xlu0 %457, %v420
        %v459 = vpop.permute.xlu0 %458
        %462 = vset.pattern.permute.xlu0 0
        %463 = vperm.xlu0 %462, %v421
        %v464 = vpop.permute.xlu0 %463
        %467 = vset.pattern.permute.xlu0 0
        %468 = vperm.xlu0 %467, %v422
        %v469 = vpop.permute.xlu0 %468
        %472 = vset.pattern.permute.xlu0 0
        %473 = vperm.xlu0 %472, %v423
        %v474 = vpop.permute.xlu0 %473
        %477 = vset.pattern.permute.xlu0 0
        %478 = vperm.xlu0 %477, %v424
        %v479 = vpop.permute.xlu0 %478
        %482 = vset.pattern.permute.xlu0 0
        %483 = vperm.xlu0 %482, %v425
        %v484 = vpop.permute.xlu0 %483
        %487 = vset.pattern.permute.xlu0 0
        %488 = vperm.xlu0 %487, %v426
        %v489 = vpop.permute.xlu0 %488
        %492 = vset.pattern.permute.xlu0 0
        %493 = vperm.xlu0 %492, %v427
        %v494 = vpop.permute.xlu0 %493
        %497 = vset.pattern.permute.xlu0 0
        %498 = vperm.xlu0 %497, %v428
        %v499 = vpop.permute.xlu0 %498
        %502 = vset.pattern.permute.xlu0 0
        %503 = vperm.xlu0 %502, %v429
        %v504 = vpop.permute.xlu0 %503
        %507 = vset.pattern.permute.xlu0 0
        %508 = vperm.xlu0 %507, %v430
        %v509 = vpop.permute.xlu0 %508
        %v511 = vadd.f32 %v399, %v434
        %v512 = vadd.f32 %v400, %v439
        %v513 = vadd.f32 %v401, %v444
        %v514 = vadd.f32 %v402, %v449
        %v515 = vadd.f32 %v403, %v454
        %v516 = vadd.f32 %v404, %v459
        %v517 = vadd.f32 %v405, %v464
        %v518 = vadd.f32 %v406, %v469
        %v519 = vadd.f32 %v407, %v474
        %v520 = vadd.f32 %v408, %v479
        %v521 = vadd.f32 %v409, %v484
        %v522 = vadd.f32 %v410, %v489
        %v523 = vadd.f32 %v411, %v494
        %v524 = vadd.f32 %v412, %v499
        %v525 = vadd.f32 %v413, %v504
        %v526 = vadd.f32 %v414, %v509
        %vm527 = vcmp.gt.f32.partialorder %v511, 0.0
        %vm528 = vcmp.gt.f32.partialorder %v512, 0.0
        %vm529 = vcmp.gt.f32.partialorder %v513, 0.0
        %vm530 = vcmp.gt.f32.partialorder %v514, 0.0
        %vm531 = vcmp.gt.f32.partialorder %v515, 0.0
        %vm532 = vcmp.gt.f32.partialorder %v516, 0.0
        %vm533 = vcmp.gt.f32.partialorder %v517, 0.0
        %vm534 = vcmp.gt.f32.partialorder %v518, 0.0
        %vm535 = vcmp.gt.f32.partialorder %v519, 0.0
        %vm536 = vcmp.gt.f32.partialorder %v520, 0.0
        %vm537 = vcmp.gt.f32.partialorder %v521, 0.0
        %vm538 = vcmp.gt.f32.partialorder %v522, 0.0
        %vm539 = vcmp.gt.f32.partialorder %v523, 0.0
        %vm540 = vcmp.gt.f32.partialorder %v524, 0.0
        %vm541 = vcmp.gt.f32.partialorder %v525, 0.0
        %vm542 = vcmp.gt.f32.partialorder %v526, 0.0
        %v543 = vmul.f32 %v511, 0.2
        %v544 = vmul.f32 %v512, 0.2
        %v545 = vmul.f32 %v513, 0.2
        %v546 = vmul.f32 %v514, 0.2
        %v547 = vmul.f32 %v515, 0.2
        %v548 = vmul.f32 %v516, 0.2
        %v549 = vmul.f32 %v517, 0.2
        %v550 = vmul.f32 %v518, 0.2
        %v551 = vmul.f32 %v519, 0.2
        %v552 = vmul.f32 %v520, 0.2
        %v553 = vmul.f32 %v521, 0.2
        %v554 = vmul.f32 %v522, 0.2
        %v555 = vmul.f32 %v523, 0.2
        %v556 = vmul.f32 %v524, 0.2
        %v557 = vmul.f32 %v525, 0.2
        %v558 = vmul.f32 %v526, 0.2
        %v559 = vsel %vm527, %v511, %v543
        %v560 = vsel %vm528, %v512, %v544
        %v561 = vsel %vm529, %v513, %v545
        %v562 = vsel %vm530, %v514, %v546
        %v563 = vsel %vm531, %v515, %v547
        %v564 = vsel %vm532, %v516, %v548
        %v565 = vsel %vm533, %v517, %v549
        %v566 = vsel %vm534, %v518, %v550
        %v567 = vsel %vm535, %v519, %v551
        %v568 = vsel %vm536, %v520, %v552
        %v569 = vsel %vm537, %v521, %v553
        %v570 = vsel %vm538, %v522, %v554
        %v571 = vsel %vm539, %v523, %v555
        %v572 = vsel %vm540, %v524, %v556
        %v573 = vsel %vm541, %v525, %v557
        %v574 = vsel %vm542, %v526, %v558
        %v575 = vld [vmem:[%s3] sm:$0xff]
        %v576 = vld [vmem:[%s3 + $0x8] sm:$0xff]
        %v577 = vld [vmem:[%s3 + $0x10] sm:$0xff]
        %v578 = vld [vmem:[%s3 + $0x18] sm:$0xff]
        %v579 = vld [vmem:[%s3 + $0x20] sm:$0xff]
        %v580 = vld [vmem:[%s3 + $0x28] sm:$0xff]
        %v581 = vld [vmem:[%s3 + $0x30] sm:$0xff]
        %v582 = vld [vmem:[%s3 + $0x38] sm:$0xff]
        %v583 = vld [vmem:[%s3 + $0x40] sm:$0xff]
        %v584 = vld [vmem:[%s3 + $0x48] sm:$0xff]
        %v585 = vld [vmem:[%s3 + $0x50] sm:$0xff]
        %v586 = vld [vmem:[%s3 + $0x58] sm:$0xff]
        %v587 = vld [vmem:[%s3 + $0x60] sm:$0xff]
        %v588 = vld [vmem:[%s3 + $0x68] sm:$0xff]
        %v589 = vld [vmem:[%s3 + $0x70] sm:$0xff]
        %v590 = vld [vmem:[%s3 + $0x78] sm:$0xff]
        %v591 = vld [vmem:[%s4] sm:$0xff]
        %v592 = vld [vmem:[%s4 + $0x8] sm:$0xff]
        %v593 = vld [vmem:[%s4 + $0x10] sm:$0xff]
        %v594 = vld [vmem:[%s4 + $0x18] sm:$0xff]
        %v595 = vld [vmem:[%s4 + $0x20] sm:$0xff]
        %v596 = vld [vmem:[%s4 + $0x28] sm:$0xff]
        %v597 = vld [vmem:[%s4 + $0x30] sm:$0xff]
        %v598 = vld [vmem:[%s4 + $0x38] sm:$0xff]
        %v599 = vld [vmem:[%s4 + $0x40] sm:$0xff]
        %v600 = vld [vmem:[%s4 + $0x48] sm:$0xff]
        %v601 = vld [vmem:[%s4 + $0x50] sm:$0xff]
        %v602 = vld [vmem:[%s4 + $0x58] sm:$0xff]
        %v603 = vld [vmem:[%s4 + $0x60] sm:$0xff]
        %v604 = vld [vmem:[%s4 + $0x68] sm:$0xff]
        %v605 = vld [vmem:[%s4 + $0x70] sm:$0xff]
        %v606 = vld [vmem:[%s4 + $0x78] sm:$0xff]
        %608 = vset.pattern.permute.xlu0 0
        %609 = vperm.xlu0 %608, %v591
        %v610 = vpop.permute.xlu0 %609
        %613 = vset.pattern.permute.xlu0 0
        %614 = vperm.xlu0 %613, %v592
        %v615 = vpop.permute.xlu0 %614
        %618 = vset.pattern.permute.xlu0 0
        %619 = vperm.xlu0 %618, %v593
        %v620 = vpop.permute.xlu0 %619
        %623 = vset.pattern.permute.xlu0 0
        %624 = vperm.xlu0 %623, %v594
        %v625 = vpop.permute.xlu0 %624
        %628 = vset.pattern.permute.xlu0 0
        %629 = vperm.xlu0 %628, %v595
        %v630 = vpop.permute.xlu0 %629
        %633 = vset.pattern.permute.xlu0 0
        %634 = vperm.xlu0 %633, %v596
        %v635 = vpop.permute.xlu0 %634
        %638 = vset.pattern.permute.xlu0 0
        %639 = vperm.xlu0 %638, %v597
        %v640 = vpop.permute.xlu0 %639
        %643 = vset.pattern.permute.xlu0 0
        %644 = vperm.xlu0 %643, %v598
        %v645 = vpop.permute.xlu0 %644
        %648 = vset.pattern.permute.xlu0 0
        %649 = vperm.xlu0 %648, %v599
        %v650 = vpop.permute.xlu0 %649
        %653 = vset.pattern.permute.xlu0 0
        %654 = vperm.xlu0 %653, %v600
        %v655 = vpop.permute.xlu0 %654
        %658 = vset.pattern.permute.xlu0 0
        %659 = vperm.xlu0 %658, %v601
        %v660 = vpop.permute.xlu0 %659
        %663 = vset.pattern.permute.xlu0 0
        %664 = vperm.xlu0 %663, %v602
        %v665 = vpop.permute.xlu0 %664
        %668 = vset.pattern.permute.xlu0 0
        %669 = vperm.xlu0 %668, %v603
        %v670 = vpop.permute.xlu0 %669
        %673 = vset.pattern.permute.xlu0 0
        %674 = vperm.xlu0 %673, %v604
        %v675 = vpop.permute.xlu0 %674
        %678 = vset.pattern.permute.xlu0 0
        %679 = vperm.xlu0 %678, %v605
        %v680 = vpop.permute.xlu0 %679
        %683 = vset.pattern.permute.xlu0 0
        %684 = vperm.xlu0 %683, %v606
        %v685 = vpop.permute.xlu0 %684
        %687 = vmatpush.msra.mxu0 %v574
        %688 = vmatpush.msra.mxu0 %v573
        %689 = vmatpush.msra.mxu0 %v572
        %690 = vmatpush.msra.mxu0 %v571
        %691 = vmatpush.msra.mxu0 %v570
        %692 = vmatpush.msra.mxu0 %v569
        %693 = vmatpush.msra.mxu0 %v568
        %694 = vmatpush.msra.mxu0 %v567
        %695 = vmatpush.msra.mxu0 %v566
        %696 = vmatpush.msra.mxu0 %v565
        %697 = vmatpush.msra.mxu0 %v564
        %698 = vmatpush.msra.mxu0 %v563
        %699 = vmatpush.msra.mxu0 %v562
        %700 = vmatpush.msra.mxu0 %v561
        %701 = vmatpush.msra.mxu0 %v560
        %702 = vmatpush.msra.mxu0 %v559
        %703 = vmatmul.f32.gmra.mxu0 %v575
        %v704 = vpop.f32.mrf.mxu0
        %v705 = vadd.f32 %v610, %v704
        %706 = vmatmul.f32.gmra.mxu0 %v576
        %v707 = vpop.f32.mrf.mxu0
        %v708 = vadd.f32 %v615, %v707
        %709 = vmatmul.f32.gmra.mxu0 %v577
        %v710 = vpop.f32.mrf.mxu0
        %v711 = vadd.f32 %v620, %v710
        %712 = vmatmul.f32.gmra.mxu0 %v578
        %v713 = vpop.f32.mrf.mxu0
        %v714 = vadd.f32 %v625, %v713
        %715 = vmatmul.f32.gmra.mxu0 %v579
        %v716 = vpop.f32.mrf.mxu0
        %v717 = vadd.f32 %v630, %v716
        %718 = vmatmul.f32.gmra.mxu0 %v580
        %v719 = vpop.f32.mrf.mxu0
        %v720 = vadd.f32 %v635, %v719
        %721 = vmatmul.f32.gmra.mxu0 %v581
        %v722 = vpop.f32.mrf.mxu0
        %v723 = vadd.f32 %v640, %v722
        %724 = vmatmul.f32.gmra.mxu0 %v582
        %v725 = vpop.f32.mrf.mxu0
        %v726 = vadd.f32 %v645, %v725
        %727 = vmatmul.f32.gmra.mxu0 %v583
        %v728 = vpop.f32.mrf.mxu0
        %v729 = vadd.f32 %v650, %v728
        %730 = vmatmul.f32.gmra.mxu0 %v584
        %v731 = vpop.f32.mrf.mxu0
        %v732 = vadd.f32 %v655, %v731
        %733 = vmatmul.f32.gmra.mxu0 %v585
        %v734 = vpop.f32.mrf.mxu0
        %v735 = vadd.f32 %v660, %v734
        %736 = vmatmul.f32.gmra.mxu0 %v586
        %v737 = vpop.f32.mrf.mxu0
        %v738 = vadd.f32 %v665, %v737
        %739 = vmatmul.f32.gmra.mxu0 %v587
        %v740 = vpop.f32.mrf.mxu0
        %v741 = vadd.f32 %v670, %v740
        %742 = vmatmul.f32.gmra.mxu0 %v588
        %v743 = vpop.f32.mrf.mxu0
        %v744 = vadd.f32 %v675, %v743
        %745 = vmatmul.f32.gmra.mxu0 %v589
        %v746 = vpop.f32.mrf.mxu0
        %v747 = vadd.f32 %v680, %v746
        %748 = vmatmul.f32.gmra.mxu0 %v590
        %v749 = vpop.f32.mrf.mxu0
        %v750 = vadd.f32 %v685, %v749
        %751 = vdwg.mxu0
        %vm752 = vcmp.gt.f32.partialorder %v705, 0.0
        %vm753 = vcmp.gt.f32.partialorder %v708, 0.0
        %vm754 = vcmp.gt.f32.partialorder %v711, 0.0
        %vm755 = vcmp.gt.f32.partialorder %v714, 0.0
        %vm756 = vcmp.gt.f32.partialorder %v717, 0.0
        %vm757 = vcmp.gt.f32.partialorder %v720, 0.0
        %vm758 = vcmp.gt.f32.partialorder %v723, 0.0
        %vm759 = vcmp.gt.f32.partialorder %v726, 0.0
        %vm760 = vcmp.gt.f32.partialorder %v729, 0.0
        %vm761 = vcmp.gt.f32.partialorder %v732, 0.0
        %vm762 = vcmp.gt.f32.partialorder %v735, 0.0
        %vm763 = vcmp.gt.f32.partialorder %v738, 0.0
        %vm764 = vcmp.gt.f32.partialorder %v741, 0.0
        %vm765 = vcmp.gt.f32.partialorder %v744, 0.0
        %vm766 = vcmp.gt.f32.partialorder %v747, 0.0
        %vm767 = vcmp.gt.f32.partialorder %v750, 0.0
        %v768 = vmul.f32 %v705, 0.2
        %v769 = vmul.f32 %v708, 0.2
        %v770 = vmul.f32 %v711, 0.2
        %v771 = vmul.f32 %v714, 0.2
        %v772 = vmul.f32 %v717, 0.2
        %v773 = vmul.f32 %v720, 0.2
        %v774 = vmul.f32 %v723, 0.2
        %v775 = vmul.f32 %v726, 0.2
        %v776 = vmul.f32 %v729, 0.2
        %v777 = vmul.f32 %v732, 0.2
        %v778 = vmul.f32 %v735, 0.2
        %v779 = vmul.f32 %v738, 0.2
        %v780 = vmul.f32 %v741, 0.2
        %v781 = vmul.f32 %v744, 0.2
        %v782 = vmul.f32 %v747, 0.2
        %v783 = vmul.f32 %v750, 0.2
        %v784 = vsel %vm752, %v705, %v768
        %v785 = vsel %vm753, %v708, %v769
        %v786 = vsel %vm754, %v711, %v770
        %v787 = vsel %vm755, %v714, %v771
        %v788 = vsel %vm756, %v717, %v772
        %v789 = vsel %vm757, %v720, %v773
        %v790 = vsel %vm758, %v723, %v774
        %v791 = vsel %vm759, %v726, %v775
        %v792 = vsel %vm760, %v729, %v776
        %v793 = vsel %vm761, %v732, %v777
        %v794 = vsel %vm762, %v735, %v778
        %v795 = vsel %vm763, %v738, %v779
        %v796 = vsel %vm764, %v741, %v780
        %v797 = vsel %vm765, %v744, %v781
        %v798 = vsel %vm766, %v747, %v782
        %v799 = vsel %vm767, %v750, %v783
        %v800 = vld [vmem:[%s5] sm:$0xff]
        %v801 = vld [vmem:[%s5 + $0x8] sm:$0xff]
        %v802 = vld [vmem:[%s5 + $0x10] sm:$0xff]
        %v803 = vld [vmem:[%s6] sm:$0xff]
        %v804 = vld [vmem:[%s6 + $0x8] sm:$0xff]
        %v805 = vld [vmem:[%s6 + $0x10] sm:$0xff]
        %807 = vset.pattern.permute.xlu0 0
        %808 = vperm.xlu0 %807, %v803
        %v809 = vpop.permute.xlu0 %808
        %812 = vset.pattern.permute.xlu0 0
        %813 = vperm.xlu0 %812, %v804
        %v814 = vpop.permute.xlu0 %813
        %817 = vset.pattern.permute.xlu0 0
        %818 = vperm.xlu0 %817, %v805
        %v819 = vpop.permute.xlu0 %818
        %821 = vmatpush.msra.mxu0 %v799
        %822 = vmatpush.msra.mxu0 %v798
        %823 = vmatpush.msra.mxu0 %v797
        %824 = vmatpush.msra.mxu0 %v796
        %825 = vmatpush.msra.mxu0 %v795
        %826 = vmatpush.msra.mxu0 %v794
        %827 = vmatpush.msra.mxu0 %v793
        %828 = vmatpush.msra.mxu0 %v792
        %829 = vmatpush.msra.mxu0 %v791
        %830 = vmatpush.msra.mxu0 %v790
        %831 = vmatpush.msra.mxu0 %v789
        %832 = vmatpush.msra.mxu0 %v788
        %833 = vmatpush.msra.mxu0 %v787
        %834 = vmatpush.msra.mxu0 %v786
        %835 = vmatpush.msra.mxu0 %v785
        %836 = vmatpush.msra.mxu0 %v784
        %837 = vmatmul.f32.gmra.mxu0 %v800
        %v838 = vpop.f32.mrf.mxu0
        %v839 = vadd.f32 %v809, %v838
        %840 = vmatmul.f32.gmra.mxu0 %v801
        %v841 = vpop.f32.mrf.mxu0
        %v842 = vadd.f32 %v814, %v841
        %843 = vmatmul.f32.gmra.mxu0 %v802
        %v844 = vpop.f32.mrf.mxu0
        %v845 = vadd.f32 %v819, %v844
        %846 = vdwg.mxu0
        %v847 = vlaneseq
        %v848 = vshrl.u32 %v847, 7
        %v849 = vadd.s32 %v848, 8
        %v850 = vadd.s32 %v848, 16
        %vm851 = vcmp.lt.s32.totalorder %v848, 18
        %vm852 = vcmp.lt.s32.totalorder %v849, 18
        %vm853 = vcmp.lt.s32.totalorder %v850, 18
        %vm854 = vcmp.ge.s32.totalorder %v848, 0
        %vm855 = vcmp.ge.s32.totalorder %v849, 0
        %vm856 = vcmp.ge.s32.totalorder %v850, 0
        %vm857 = vcmp.lt.s32.totalorder %v848, 10
        %vm858 = vcmp.lt.s32.totalorder %v849, 10
        %vm859 = vcmp.lt.s32.totalorder %v850, 10
        %vm860 = vmand %vm854, %vm857
        %vm861 = vmand %vm855, %vm858
        %vm862 = vmand %vm856, %vm859
        %v863 = vsel %vm860, 1, 0
        %v864 = vsel %vm861, 1, 0
        %v865 = vsel %vm862, 1, 0
        %vm866 = vcmp.eq.s32.totalorder %v863, 1
        %vm867 = vcmp.eq.s32.totalorder %v864, 1
        %vm868 = vcmp.eq.s32.totalorder %v865, 1
        %v869 = vsel %vm866, %v839, -inf
        %v870 = vsel %vm867, %v842, -inf
        %v871 = vsel %vm868, %v845, -inf
        %v872 = vmax.f32 %v869, %v870
        %v873 = vmax.f32 %v872, %v871
        %v874 = vrot.slane %v873, 4
        %v875 = vmax.f32 %v873, %v874
        %v876 = vrot.slane %v875, 2
        %v877 = vmax.f32 %v875, %v876
        %v878 = vrot.slane %v877, 1
        %v879 = vmax.f32 %v877, %v878
        %v880 = vsel %vm866, %v879, %v839
        %v881 = vsel %vm867, %v879, %v842
        %v882 = vsel %vm868, %v879, %v845
        %vm883 = vcmp.ge.s32.totalorder %v848, 10
        %vm884 = vcmp.ge.s32.totalorder %v849, 10
        %vm885 = vcmp.ge.s32.totalorder %v850, 10
        %vm886 = vmand %vm883, %vm851
        %vm887 = vmand %vm884, %vm852
        %vm888 = vmand %vm885, %vm853
        %v889 = vsel %vm886, 1, 0
        %v890 = vsel %vm887, 1, 0
        %v891 = vsel %vm888, 1, 0
        %vm892 = vcmp.eq.s32.totalorder %v889, 1
        %vm893 = vcmp.eq.s32.totalorder %v890, 1
        %vm894 = vcmp.eq.s32.totalorder %v891, 1
        %v895 = vsel %vm892, %v839, -inf
        %v896 = vsel %vm893, %v842, -inf
        %v897 = vsel %vm894, %v845, -inf
        %v898 = vmax.f32 %v895, %v896
        %v899 = vmax.f32 %v898, %v897
        %v900 = vrot.slane %v899, 4
        %v901 = vmax.f32 %v899, %v900
        %v902 = vrot.slane %v901, 2
        %v903 = vmax.f32 %v901, %v902
        %v904 = vrot.slane %v903, 1
        %v905 = vmax.f32 %v903, %v904
        %v906 = vsel %vm892, %v905, %v880
        %v907 = vsel %vm893, %v905, %v881
        %v908 = vsel %vm894, %v905, %v882
        %v909 = vsub.f32 %v839, %v906
        %v910 = vsub.f32 %v842, %v907
        %v911 = vsub.f32 %v845, %v908
        %v912 = vmul.f32 %v909, 1.442695
        %v913 = vpow.pop %v912
        %v914 = vmul.f32 %v910, 1.442695
        %v915 = vpow.pop %v914
        %v916 = vmul.f32 %v911, 1.442695
        %v917 = vpow.pop %v916
        %v918 = vsel %vm866, %v913, 0.0
        %v919 = vsel %vm867, %v915, 0.0
        %v920 = vsel %vm868, %v917, 0.0
        %v921 = vadd.f32 %v918, %v919
        %v922 = vadd.f32 %v921, %v920
        %v923 = vrot.slane %v922, 4
        %v924 = vadd.f32 %v922, %v923
        %v925 = vrot.slane %v924, 2
        %v926 = vadd.f32 %v924, %v925
        %v927 = vrot.slane %v926, 1
        %v928 = vadd.f32 %v926, %v927
        %v929 = vrcp.pop %v928
        %v930 = vsel %vm866, %v929, 1.0
        %v931 = vsel %vm867, %v929, 1.0
        %v932 = vsel %vm868, %v929, 1.0
        %v933 = vsel %vm892, %v913, 0.0
        %v934 = vsel %vm893, %v915, 0.0
        %v935 = vsel %vm894, %v917, 0.0
        %v936 = vadd.f32 %v933, %v934
        %v937 = vadd.f32 %v936, %v935
        %v938 = vrot.slane %v937, 4
        %v939 = vadd.f32 %v937, %v938
        %v940 = vrot.slane %v939, 2
        %v941 = vadd.f32 %v939, %v940
        %v942 = vrot.slane %v941, 1
        %v943 = vadd.f32 %v941, %v942
        %v944 = vrcp.pop %v943
        %v945 = vsel %vm892, %v944, %v930
        %v946 = vsel %vm893, %v944, %v931
        %v947 = vsel %vm894, %v944, %v932
        %v948 = vmul.f32 %v913, %v945
        %v949 = vmul.f32 %v915, %v946
        %v950 = vmul.f32 %v917, %v947
        %v951 = vsel %vm851, 1, 0
        %v952 = vsel %vm852, 1, 0
        %v953 = vsel %vm853, 1, 0
        %vm954 = vcmp.eq.s32.totalorder %v951, 1
        %vm955 = vcmp.eq.s32.totalorder %v952, 1
        %vm956 = vcmp.eq.s32.totalorder %v953, 1
        %v957 = vsel %vm954, %v948, %v839
        %v958 = vsel %vm955, %v949, %v842
        %v959 = vsel %vm956, %v950, %v845
        %960 = vst [vmem:[%s291] sm:$0xff] %v957
        %961 = vst [vmem:[%s291 + $0x8] sm:$0xff] %v958
        %962 = vst [vmem:[%s291 + $0x10] sm:$0xff] %v959
        %s963 = sand.u32 %s197, 1
        %s964 = scalar_lea.sflag [#allocation3], %s963
        %s965 = sand.u32 %s197, 1
        %s966 = smul.addr %s965, 24
        %s967 = scalar_lea.vmem [#allocation2], %s966
        // Predicated region
        $region49: #{tpu_custom_call.1} parent=47 // pred_check
          %p968 = pneg %p207
        $region50: #{tpu_custom_call.1} parent=47 // pred_check_branch
          %970 = sbr.rel (%p968) target = $region52
        $region51: #{tpu_custom_call.1} parent=47 // pred_region
          %972 = vsyncadd %s964, 0
          %s973 = smul.addr %s25, 6
          %s974 = sadd.s32 %s26, %s973
          %s975 = smul.addr %s974, 8
          %s976 = scalar_lea.hbm %s7, %s975
          %s977 = sshll.u32 %s967, 4
          %s978 = int_to_ptr.vmem [resolvable:$true] %s977
          %s979 = sshll.u32 %s976, 4
          %s980 = int_to_ptr.hbm [resolvable:$true] %s979
          %985 = dma.vmem_to_hbm [thread:$0]  %s978, 384, %s980, %s964, 128, 256, 8
        $region52: #{tpu_custom_call.1} parent=47 // pred_fallthru
          _
      $region48: #{tpu_custom_call.1} parent=5 // pred_fallthru
        _
      %p986 = scmp.le.s32.totalorder 2, %s16
      // Predicated region
      $region53: #{tpu_custom_call.1} parent=5 // pred_check
        %p987 = pneg %p986
      $region54: #{tpu_custom_call.1} parent=5 // pred_check_branch
        %989 = sbr.rel (%p987) target = $region56
      $region55: #{tpu_custom_call.1} parent=5 // pred_region
        %s990 = ssub.s32 %s16, 2
        // Predicated region
        $region57: #{tpu_custom_call.1} parent=55 // pred_check
          %p991 = pneg %p213
        $region58: #{tpu_custom_call.1} parent=55 // pred_check_branch
          %993 = sbr.rel (%p991) target = $region60
        $region59: #{tpu_custom_call.1} parent=55 // pred_region
          %s994 = sand.u32 %s198, 1
          %s995 = scalar_lea.sflag [#allocation3], %s994
          %s996 = sand.u32 %s198, 1
          %s997 = smul.addr %s996, 24
          %s998 = scalar_lea.vmem [#allocation2], %s997
          %1000 = dma.done %s995, 384
        $region60: #{tpu_custom_call.1} parent=55 // pred_fallthru
          _
      $region56: #{tpu_custom_call.1} parent=5 // pred_fallthru
        _
    $region6: #{tpu_custom_call.1} parent=1 // loop_footer
      %s20 = sadd.s32 1, %s16
    $region7: #{tpu_custom_call.1} parent=1 // loop_footer_branch
      %15 = sbr.rel target = $region3
    $region8: #{tpu_custom_call.1} parent=1 // loop_exit
      _
    %1001 = vsyncpa [#allocation3], 1
    %s1002 = scalar_lea.sflag [#allocation3], 1
    %1003 = vsyncpa %s1002, 1

</llo_original>
